<compile_context>
chip_gen: v5e
topology: v5e:2x2
jax: 0.10.0
libtpu: 0.0.40
codegen_flags: <defaults>
</compile_context>

<pallas_src>
import functools

import jax
import jax.numpy as jnp
from jax import lax
from jax.experimental import pallas as pl
from jax.experimental.pallas import tpu as pltpu

SUBLANES = 8
LANES = 128


def _round_up(a, b):
    return (a + b - 1) // b * b


def _cdiv(a, b):
    return (a + b - 1) // b


def maml_block_kernel(x_ref, p1_ref, p23t_ref, out_ref):
    """Fused MAMLBlock forward, transposed (class-major) output.

    x_ref:    [tile_m, in_dim]       activation row tile
    p1_ref:   [in_dim + 1, hidden]   rows 0..in_dim-1 = W1, last row = b1
    p23t_ref: [n_pad, hidden + 1]    cols 0..hidden-1 = (W2@W3)^T,
                                     last col = (b2@W3 + b3)^T
                                     (rows >= n_way: zero weights, -1e30 bias)
    out_ref:  [n_pad, tile_m]        transposed scores (lane-dense store)
    """
    din = x_ref.shape[1]
    dh = p1_ref.shape[1]

    x = x_ref[...]

    # Layer 1: Linear(in_dim -> hidden) + ReLU (bias packed as last row of p1).
    w1 = p1_ref[0:din, :]
    b1 = p1_ref[din:din + 1, :]
    h = jnp.dot(x, w1, preferred_element_type=jnp.float32) + b1
    h = jnp.maximum(h, 0.0)                                   # [tile_m, hidden]

    # Layers 2+3 folded and emitted transposed straight from the MXU:
    #   scores^T[j, m] = sum_k (W2@W3)^T[j, k] * h[m, k] + (b2@W3 + b3)[j]
    # NT matmul: contract the last dims of both operands (Q @ K^T form).
    w23t = p23t_ref[:, 0:dh]                                  # [n_pad, hidden]
    b23t = p23t_ref[:, dh:dh + 1]                             # [n_pad, 1]
    s_t = lax.dot_general(w23t, h, (((1,), (1,)), ((), ())),
                          preferred_element_type=jnp.float32) + b23t

    out_ref[...] = s_t.astype(out_ref.dtype)


def prepare_params(w1, b1, w2, b2, w3, b3):
    """One-time wrapper-side folding / packing of MAMLBlock parameters.

    Inputs already transposed to [in_features, out_features]:
      w1: [in_dim, hidden],  b1: [1, hidden]
      w2: [hidden, out_dim], b2: [1, out_dim]
      w3: [out_dim, n_way],  b3: [1, n_way]
    Returns:
      p1:   [in_dim + 1, hidden]   packed (W1; b1)
      p23t: [n_pad, hidden + 1]    packed ((W2@W3)^T | (b2@W3 + b3)^T), classes
                                   padded to a multiple of 8 sublanes; padded
                                   rows get zero weights and a -1e30 bias.
    """
    hidden = w1.shape[1]
    n_way = w3.shape[1]
    n_pad = _round_up(n_way, SUBLANES)

    w23 = w2 @ w3                 # [hidden, n_way]
    b23 = b2 @ w3 + b3            # [1, n_way]

    p1 = jnp.concatenate([w1, b1], axis=0).astype(jnp.float32)

    p23t = jnp.zeros((n_pad, hidden + 1), jnp.float32)
    p23t = p23t.at[:, hidden].set(-1e30)             # padded-class bias
    p23t = p23t.at[:n_way, :hidden].set(w23.T)
    p23t = p23t.at[:n_way, hidden].set(b23[0])
    return p1, p23t


def _choose_tile(n, tile_m):
    """Row-tile choice: full-extent block for small N (always layout-legal),
    otherwise a multiple of 128 capped so the grid has >= 2 steps (keeps both
    v7x TensorCores busy via the 'parallel' grid axis)."""
    if n < 2 * LANES:
        return n
    tile = min(tile_m, _round_up(_cdiv(n, 2), LANES))
    return max(tile, LANES)


@functools.partial(jax.jit, static_argnames=("n_way", "tile_m"))
def maml_block_forward(x, p1, p23t, *, n_way, tile_m=4096):
    """scores = Linear3(Linear2(relu(Linear1(x)))) with layers 2/3 pre-folded.

    x:    [N, in_dim] float32
    p1:   [in_dim + 1, hidden]   packed (W1; b1)
    p23t: [n_pad, hidden + 1]    packed transposed folded layer-2/3 params
    Returns [N, n_way] float32.
    """
    n, din = x.shape
    dh = p1.shape[1]
    n_pad = p23t.shape[0]

    tile = _choose_tile(n, tile_m)
    grid_m = _cdiv(n, tile)

    scores_t = pl.pallas_call(
        maml_block_kernel,
        out_shape=jax.ShapeDtypeStruct((n_pad, n), jnp.float32),
        grid=(grid_m,),
        in_specs=[
            pl.BlockSpec((tile, din), lambda i: (i, 0)),
            pl.BlockSpec((din + 1, dh), lambda i: (0, 0)),    # weights stay VMEM-resident
            pl.BlockSpec((n_pad, dh + 1), lambda i: (0, 0)),  # weights stay VMEM-resident
        ],
        out_specs=pl.BlockSpec((n_pad, tile), lambda i: (0, i)),
        compiler_params=pltpu.CompilerParams(
            dimension_semantics=("parallel",)),   # shards row tiles across v7x's 2 TCs
    )(x, p1, p23t)

    # Tiny (n_pad, N) -> (N, n_way) slice + transpose outside the kernel.
    # Padded class rows hold -1e30 scores, so a downstream softmax/argmax could
    # also consume `scores_t` directly and skip this step entirely.
    return scores_t[:n_way, :].T


def reference_forward(x, w1, b1, w2, b2, w3, b3):
    h = jnp.maximum(x @ w1 + b1, 0.0)
    f = h @ w2 + b2
    return f @ w3 + b3


if __name__ == "__main__":
    # Module hyperparameters (small, consistent with MAMLBlock.__init__).
    feat_dim = 32
    hidden_dim = feat_dim // 2       # 16
    out_dim = hidden_dim * 2         # 32
    n_way = 5
    batch = 8

    key = jax.random.PRNGKey(0)
    kx, k1, kb1, k2, kb2, k3, kx2 = jax.random.split(key, 7)

    x = jax.random.normal(kx, (batch, feat_dim), dtype=jnp.float32)

    # PyTorch Linear-style uniform init scaled by 1/sqrt(fan_in); stored
    # transposed as [in, out] so each layer is y = x @ W + b.
    def lin_init(k, fan_in, fan_out):
        bound = 1.0 / jnp.sqrt(fan_in)
        return jax.random.uniform(k, (fan_in, fan_out), jnp.float32,
                                  minval=-bound, maxval=bound)

    w1 = lin_init(k1, feat_dim, hidden_dim)
    b1 = jax.random.uniform(kb1, (1, hidden_dim), jnp.float32,
                            minval=-1.0 / jnp.sqrt(feat_dim),
                            maxval=1.0 / jnp.sqrt(feat_dim))
    w2 = lin_init(k2, hidden_dim, out_dim)
    b2 = jax.random.uniform(kb2, (1, out_dim), jnp.float32,
                            minval=-1.0 / jnp.sqrt(hidden_dim),
                            maxval=1.0 / jnp.sqrt(hidden_dim))
    w3 = lin_init(k3, out_dim, n_way)
    b3 = jnp.zeros((1, n_way), jnp.float32)   # classifier.bias.data.fill_(0)

    # One-time parameter folding/packing (amortized across forward calls).
    p1, p23t = prepare_params(w1, b1, w2, b2, w3, b3)

    # Small batch: single full-extent block path.
    scores = maml_block_forward(x, p1, p23t, n_way=n_way)
    scores = jax.block_until_ready(scores)
    ref = reference_forward(x, w1, b1, w2, b2, w3, b3)
    assert scores.shape == (batch, n_way)
    # Folding W2@W3 / biases reassociates FP sums -> slightly loose tolerance.
    assert jnp.allclose(scores, ref, atol=1e-4, rtol=1e-4)

    # Larger batch: exercises the multi-tile (grid >= 2, parallel) path.
    big_batch = 512
    xb = jax.random.normal(kx2, (big_batch, feat_dim), dtype=jnp.float32)
    scores_b = maml_block_forward(xb, p1, p23t, n_way=n_way)
    scores_b = jax.block_until_ready(scores_b)
    ref_b = reference_forward(xb, w1, b1, w2, b2, w3, b3)
    assert scores_b.shape == (big_batch, n_way)
    assert jnp.allclose(scores_b, ref_b, atol=1e-4, rtol=1e-4)

    # TODO(synk): the `fit` inner-loop (MAML fast-weight adaptation with
    # autograd + CrossEntropyLoss) is training logic, not part of the forward
    # hot path; only the forward/predict pass is implemented as a Pallas kernel.

    print("KERNEL_OK")
</pallas_src>

<mosaic_0001>
module attributes {stable_mosaic.version = 11 : i64} {
  func.func @maml_block_kernel(%arg0: i32, %arg1: memref<8x32xf32, #tpu.memory_space<vmem>>, %arg2: memref<33x16xf32, #tpu.memory_space<vmem>>, %arg3: memref<8x17xf32, #tpu.memory_space<vmem>>, %arg4: memref<8x8xf32, #tpu.memory_space<vmem>>) attributes {dimension_semantics = [#tpu.dimension_semantics<parallel>], iteration_bounds = array<i64: 1>, scalar_prefetch = 0 : i64, scratch_operands = 0 : i64, tpu.core_type = #tpu.core_type<tc>, window_params = [{transform_indices = @transform_0, window_bounds = array<i64: 8, 32>}, {pipeline_mode = #tpu.pipeline_mode<synchronous>, transform_indices = @transform_1, window_bounds = array<i64: 33, 16>}, {pipeline_mode = #tpu.pipeline_mode<synchronous>, transform_indices = @transform_2, window_bounds = array<i64: 8, 17>}, {transform_indices = @transform_3, window_bounds = array<i64: 8, 8>}]} {
    %c0 = arith.constant 0 : index
    %c0_0 = arith.constant 0 : index
    %0 = vector.load %arg1[%c0, %c0_0] : memref<8x32xf32, #tpu.memory_space<vmem>>, vector<8x32xf32>
    %c0_1 = arith.constant 0 : index
    %c0_2 = arith.constant 0 : index
    %1 = vector.load %arg2[%c0_1, %c0_2] : memref<33x16xf32, #tpu.memory_space<vmem>>, vector<32x16xf32>
    %c32 = arith.constant 32 : index
    %c0_3 = arith.constant 0 : index
    %2 = vector.load %arg2[%c32, %c0_3] : memref<33x16xf32, #tpu.memory_space<vmem>>, vector<1x16xf32>
    %cst = arith.constant dense<0.000000e+00> : vector<8x16xf32>
    %3 = tpu.matmul %0, %1, %cst {dimension_numbers = #tpu.dot_dimension_numbers<[1], [0], [0], [1], [0, 0, 1, 1], [], []>} : vector<8x32xf32>, vector<32x16xf32>, vector<8x16xf32> -> vector<8x16xf32>
    %4 = vector.broadcast %2 : vector<1x16xf32> to vector<8x16xf32>
    %5 = arith.addf %3, %4 : vector<8x16xf32>
    %cst_4 = arith.constant 0.000000e+00 : f32
    %6 = vector.broadcast %cst_4 : f32 to vector<8x16xf32>
    %7 = arith.maximumf %5, %6 : vector<8x16xf32>
    %c0_5 = arith.constant 0 : index
    %c0_6 = arith.constant 0 : index
    %8 = vector.load %arg3[%c0_5, %c0_6] : memref<8x17xf32, #tpu.memory_space<vmem>>, vector<8x16xf32>
    %c0_7 = arith.constant 0 : index
    %c16 = arith.constant 16 : index
    %9 = vector.load %arg3[%c0_7, %c16] : memref<8x17xf32, #tpu.memory_space<vmem>>, vector<8x1xf32>
    %cst_8 = arith.constant dense<0.000000e+00> : vector<8x8xf32>
    %10 = tpu.matmul %8, %7, %cst_8 {dimension_numbers = #tpu.dot_dimension_numbers<[1], [1], [0], [0], [0, 0, 1, 0], [], []>} : vector<8x16xf32>, vector<8x16xf32>, vector<8x8xf32> -> vector<8x8xf32>
    %11 = vector.broadcast %9 : vector<8x1xf32> to vector<8x8xf32>
    %12 = arith.addf %10, %11 : vector<8x8xf32>
    %c0_9 = arith.constant 0 : index
    %c0_10 = arith.constant 0 : index
    %13 = vector.load %arg4[%c0_9, %c0_10] : memref<8x8xf32, #tpu.memory_space<vmem>>, vector<8x8xf32>
    tpu.vector_store %arg4[%c0_9, %c0_10], %12 {strides = array<i32>} : memref<8x8xf32, #tpu.memory_space<vmem>>, vector<8x8xf32>,
    return
  }
  func.func @transform_0(%arg0: i32) -> (i32, i32) {
    %c0_i32 = arith.constant 0 : i32
    %c0_i32_0 = arith.constant 0 : i32
    return %arg0, %c0_i32 : i32, i32
  }
  func.func @transform_1(%arg0: i32) -> (i32, i32) {
    %c0_i32 = arith.constant 0 : i32
    %c0_i32_0 = arith.constant 0 : i32
    %c0_i32_1 = arith.constant 0 : i32
    return %c0_i32, %c0_i32_0 : i32, i32
  }
  func.func @transform_2(%arg0: i32) -> (i32, i32) {
    %c0_i32 = arith.constant 0 : i32
    %c0_i32_0 = arith.constant 0 : i32
    %c0_i32_1 = arith.constant 0 : i32
    return %c0_i32, %c0_i32_0 : i32, i32
  }
  func.func @transform_3(%arg0: i32) -> (i32, i32) {
    %c0_i32 = arith.constant 0 : i32
    %c0_i32_0 = arith.constant 0 : i32
    return %c0_i32, %arg0 : i32, i32
  }
}

</mosaic_0001>

<llo_original>
// kernel: maml_block_forward.1
$region0: #{maml_block_forward.1}
  #allocation0 [shape = 'u32[]', space=smem, size = 0x4, offset = 0x4, fixed_abs, tag = 'smem constant byte address 0x4 - core index']
  #allocation1 [shape = 'u32[72,128]{1,0:T(1,128)}', space=vmem, size = 0x9000, scoped, tag = 'internal scratch']
  %s0 = inlined_call_operand.vmem [shape: f32[8,32], index: 0, kind: input, shape index: {}]
  %s1 = inlined_call_operand.vmem [shape: f32[33,16], index: 1, kind: input, shape index: {}]
  %s2 = inlined_call_operand.vmem [shape: f32[8,17], index: 2, kind: input, shape index: {}]
  %s3 = inlined_call_operand.vmem [shape: f32[8,8], index: 3, kind: output, shape index: {}]
  %s4 = sld [smem:[#allocation0]]
  $region22: #{maml_block_forward.1} parent=0
    _
  %s6 = ssub.s32 1, %s4
  %s7 = scalar_select 0, %s6, %s4
  // Predicated region
  $region2: #{maml_block_forward.1} parent=0 // pred_check
    _
  $region3: #{maml_block_forward.1} parent=0 // pred_check_branch
    %9 = sbr.rel (0) target = $region5
  $region4: #{maml_block_forward.1} parent=0 // pred_region
    _
  $region5: #{maml_block_forward.1} parent=0 // pred_fallthru
    _
  // Predicated region
  $region6: #{maml_block_forward.1} parent=0 // pred_check
    _
  $region7: #{maml_block_forward.1} parent=0 // pred_check_branch
    %11 = sbr.rel (0) target = $region9
  $region8: #{maml_block_forward.1} parent=0 // pred_region
    _
  $region9: #{maml_block_forward.1} parent=0 // pred_fallthru
    _
  // Predicated region
  $region10: #{maml_block_forward.1} parent=0 // pred_check
    _
  $region11: #{maml_block_forward.1} parent=0 // pred_check_branch
    %13 = sbr.rel (0) target = $region13
  $region12: #{maml_block_forward.1} parent=0 // pred_region
    _
  $region13: #{maml_block_forward.1} parent=0 // pred_fallthru
    _
  %v14 = vld [vmem:[%s0] sm:$0xff]
  %v15 = vld [vmem:[%s1] sm:$0xff]
  %v16 = vld [vmem:[%s1 + $0x8] sm:$0xff]
  %v17 = vld [vmem:[%s1 + $0x10] sm:$0xff]
  %v18 = vld [vmem:[%s1 + $0x18] sm:$0xff]
  %v19 = vld [vmem:[%s1 + $0x20] sm:$0x1]
  %v20 = vperm.slane %v19, 0
  %vm21 = vcmask 261120
  %v23 = vsel %vm21, %v14, 0
  %25 = vmatpush.msra.mxu0 0.0
  %26 = vmatpush.msra.mxu0 0.0
  %27 = vmatpush.msra.mxu0 0.0
  %28 = vmatpush.msra.mxu0 0.0
  %29 = vmatpush.msra.mxu0 0.0
  %30 = vmatpush.msra.mxu0 0.0
  %31 = vmatpush.msra.mxu0 0.0
  %32 = vmatpush.msra.mxu0 0.0
  %33 = vmatpush.msra.mxu0 0.0
  %34 = vmatpush.msra.mxu0 0.0
  %35 = vmatpush.msra.mxu0 0.0
  %36 = vmatpush.msra.mxu0 0.0
  %37 = vmatpush.msra.mxu0 %v18
  %38 = vmatpush.msra.mxu0 %v17
  %39 = vmatpush.msra.mxu0 %v16
  %40 = vmatpush.msra.mxu0 %v15
  %41 = vmatmul.f32.gmra.mxu0 %v23
  %v42 = vpop.f32.mrf.mxu0
  %v43 = vadd.f32 %v20, %v42
  %44 = vdwg.mxu0
  %v45 = vmax.f32 %v43, 0.0
  %v46 = vld [vmem:[%s2] sm:$0xff]
  %48 = vset.pattern.permute.xlu0 16
  %49 = vperm.xlu0 %48, %v46
  %v50 = vpop.permute.xlu0 %49
  %vm52 = vcmask 130048
  %v53 = vsel %vm52, %v46, 0
  %v56 = vsel %vm52, %v45, 0
  %58 = vmatpush.xpose.msra.mxu0 0.0
  %59 = vmatpush.xpose.msra.mxu0 0.0
  %60 = vmatpush.xpose.msra.mxu0 0.0
  %61 = vmatpush.xpose.msra.mxu0 0.0
  %62 = vmatpush.xpose.msra.mxu0 0.0
  %63 = vmatpush.xpose.msra.mxu0 0.0
  %64 = vmatpush.xpose.msra.mxu0 0.0
  %65 = vmatpush.xpose.msra.mxu0 0.0
  %66 = vmatpush.xpose.msra.mxu0 0.0
  %67 = vmatpush.xpose.msra.mxu0 0.0
  %68 = vmatpush.xpose.msra.mxu0 0.0
  %69 = vmatpush.xpose.msra.mxu0 0.0
  %70 = vmatpush.xpose.msra.mxu0 0.0
  %71 = vmatpush.xpose.msra.mxu0 0.0
  %72 = vmatpush.xpose.msra.mxu0 0.0
  %73 = vmatpush.xpose.msra.mxu0 %v56
  %74 = vmatmul.f32.gmra.mxu0 %v53
  %v75 = vpop.f32.mrf.mxu0
  %v76 = vadd.f32 %v50, %v75
  %77 = vdwg.mxu0
  %vm78 = vcmask 64512
  %79 = vst.msk [vmem:[%s3] sm:$0xff] %vm78, %v76
  // Predicated region
  $region14: #{maml_block_forward.1} parent=0 // pred_check
    _
  $region15: #{maml_block_forward.1} parent=0 // pred_check_branch
    %81 = sbr.rel (0) target = $region17
  $region16: #{maml_block_forward.1} parent=0 // pred_region
    _
  $region17: #{maml_block_forward.1} parent=0 // pred_fallthru
    _
  // Predicated region
  $region18: #{maml_block_forward.1} parent=0 // pred_check
    _
  $region19: #{maml_block_forward.1} parent=0 // pred_check_branch
    %83 = sbr.rel (0) target = $region21
  $region20: #{maml_block_forward.1} parent=0 // pred_region
    _
  $region21: #{maml_block_forward.1} parent=0 // pred_fallthru
    _

</llo_original>
